<compile_context>
chip_gen: v6e
topology: v6e:2x2x1
jax: 0.10.0
libtpu: 0.0.40
codegen_flags: <defaults>
</compile_context>

<pallas_src>
import math

import jax
import jax.numpy as jnp
from jax import lax
from jax.experimental import pallas as pl
from jax.experimental.pallas import tpu as pltpu


def _qk_kernel(scale_ref, q_ref, k_ref, o_ref):
    # q_ref: (C, tT), k_ref: (C, tS or S), o_ref: (tT, tS or S); batch squeezed.
    # Contract over C on the MXU:  (C, tT)^T @ (C, tS) -> (tT, tS), f32 acc.
    w = lax.dot_general(
        q_ref[...], k_ref[...],
        dimension_numbers=(((0,), (0,)), ((), ())),
        preferred_element_type=jnp.float32,
    )
    # Fold both scale multiplies into one f32 multiply on the accumulator:
    #   (q*s)^T (k*s) == s^2 * (q^T k)
    # Applied post-dot in f32: hidden under the MXU, keeps MXU operands in
    # their native dtype, and avoids s^2 underflow for narrow input dtypes.
    s2 = scale_ref[0] * scale_ref[0]
    o_ref[...] = (w * s2).astype(o_ref.dtype)


def _pick_tile(dim: int, max_tile: int, align: int) -> int:
    """Largest tile <= max_tile, multiple of `align`, preferring exact divisors
    of `dim` so the writeback path uses unmasked (non-ragged) stores."""
    if dim <= max_tile:
        return dim
    fallback = (max_tile // align) * align
    t = fallback
    while t >= align:
        if dim % t == 0:
            return t
        t -= align
    return fallback


def quant_qk_matmul(q, k, scale, *, tile_t=256, tile_s=2048,
                    vmem_budget_bytes=40 * 1024 * 1024, out_dtype=None):
    """weight = einsum('bct,bcs->bts', q*scale, k*scale) via a Pallas kernel."""
    B, C, T = q.shape
    Bk, Ck, S = k.shape
    assert B == Bk and C == Ck
    out_dtype = q.dtype if out_dtype is None else jnp.dtype(out_dtype)

    in_itemsize = q.dtype.itemsize
    out_itemsize = jnp.dtype(out_dtype).itemsize

    tT = _pick_tile(T, tile_t, 128)
    tS = _pick_tile(S, tile_s, 128)
    nT = pl.cdiv(T, tT)
    nS = pl.cdiv(S, tS)

    q_tile_bytes = C * tT * in_itemsize
    # Resident plan: k blocked as the full per-batch (C, S) slab, output rows
    # (tT, S).  Everything is double-buffered by the pipeline.
    resident_ws = 2 * (q_tile_bytes + C * S * in_itemsize
                       + tT * S * out_itemsize)
    # Tiled fallback plan: k blocked (C, tS), output (tT, tS).
    tiled_ws = 2 * (q_tile_bytes + C * tS * in_itemsize
                    + tT * tS * out_itemsize)

    k_resident = resident_ws <= vmem_budget_bytes

    flops = 2 * B * C * T * S
    scale_arr = jnp.asarray([scale], dtype=jnp.float32)

    if k_resident:
        # Grid (B, nT): q tile changes per step, k slab only per batch (DMA'd
        # once per batch), output is a big lane-dense (tT, S) slab per step.
        grid_spec = pltpu.PrefetchScalarGridSpec(
            num_scalar_prefetch=1,          # scale lives in SMEM, not the trace
            grid=(B, nT),
            in_specs=[
                pl.BlockSpec((pl.Squeezed(), C, tT), lambda b, t, sc: (b, 0, t)),
                pl.BlockSpec((pl.Squeezed(), C, S), lambda b, t, sc: (b, 0, 0)),
            ],
            out_specs=pl.BlockSpec((pl.Squeezed(), tT, S),
                                   lambda b, t, sc: (b, t, 0)),
        )
        dim_sem = ("parallel", "parallel")
        working_set = resident_ws
        bytes_accessed = (B * C * T * in_itemsize       # q once per (b, t)
                          + B * C * S * in_itemsize     # k once per batch
                          + B * T * S * out_itemsize)   # output writeback
    else:
        # Tiled fallback for very large S / C.  S innermost: q's block index is
        # constant across the S sweep so the q tile stays resident; k is
        # re-read once per T tile (mitigated by the large tS).
        grid_spec = pltpu.PrefetchScalarGridSpec(
            num_scalar_prefetch=1,
            grid=(B, nT, nS),
            in_specs=[
                pl.BlockSpec((pl.Squeezed(), C, tT),
                             lambda b, t, s, sc: (b, 0, t)),
                pl.BlockSpec((pl.Squeezed(), C, tS),
                             lambda b, t, s, sc: (b, 0, s)),
            ],
            out_specs=pl.BlockSpec((pl.Squeezed(), tT, tS),
                                   lambda b, t, s, sc: (b, t, s)),
        )
        dim_sem = ("parallel", "parallel", "parallel")
        working_set = tiled_ws
        bytes_accessed = (B * C * T * in_itemsize
                          + nT * B * C * S * in_itemsize   # k re-read per T tile
                          + B * T * S * out_itemsize)

    # Cover the double-buffered working set with headroom, but stay well under
    # v7x's 64 MiB physical VMEM (v5e/v6e have 128 MiB).
    vmem_limit = max(32 * 1024 * 1024, working_set + 4 * 1024 * 1024)

    return pl.pallas_call(
        _qk_kernel,
        out_shape=jax.ShapeDtypeStruct((B, T, S), out_dtype),
        grid_spec=grid_spec,
        compiler_params=pltpu.CompilerParams(
            dimension_semantics=dim_sem,
            vmem_limit_bytes=vmem_limit,
        ),
        cost_estimate=pl.CostEstimate(
            flops=flops, transcendentals=0, bytes_accessed=bytes_accessed),
    )(scale_arr, q, k)


if __name__ == "__main__":
    # --- Test 1: small module-like shapes (resident-k path, single T tile) ---
    B, C, T, S = 2, 32, 64, 64
    kq, kk = jax.random.split(jax.random.PRNGKey(0))
    q = jax.random.normal(kq, (B, C, T), dtype=jnp.float32)
    k = jax.random.normal(kk, (B, C, S), dtype=jnp.float32)
    scale = float(1.0 / math.sqrt(C))       # attention-style scale; externally
                                            # set attribute in the module.
    out = jax.block_until_ready(quant_qk_matmul(q, k, scale))
    ref = jnp.einsum("bct,bcs->bts", q * scale, k * scale)
    assert out.shape == (B, T, S)
    assert jnp.allclose(out, ref, atol=1e-4, rtol=1e-4)

    # --- Test 2: resident-k path with T tiling and lane-dense (tT, S) output ---
    B2, C2, T2, S2 = 2, 64, 512, 512
    kq2, kk2 = jax.random.split(jax.random.PRNGKey(1))
    q2 = jax.random.normal(kq2, (B2, C2, T2), dtype=jnp.float32)
    k2 = jax.random.normal(kk2, (B2, C2, S2), dtype=jnp.float32)
    scale2 = float(1.0 / math.sqrt(C2))
    out2 = jax.block_until_ready(quant_qk_matmul(q2, k2, scale2, tile_t=256))
    ref2 = jnp.einsum("bct,bcs->bts", q2 * scale2, k2 * scale2)
    assert jnp.allclose(out2, ref2, atol=1e-3, rtol=1e-3)

    # --- Test 3: tiled fallback path (tiny VMEM budget) + ragged T edge tile ---
    B3, C3, T3, S3 = 2, 48, 320, 384
    kq3, kk3 = jax.random.split(jax.random.PRNGKey(2))
    q3 = jax.random.normal(kq3, (B3, C3, T3), dtype=jnp.float32)
    k3 = jax.random.normal(kk3, (B3, C3, S3), dtype=jnp.float32)
    scale3 = float(1.0 / math.sqrt(C3))
    out3 = jax.block_until_ready(
        quant_qk_matmul(q3, k3, scale3, tile_t=256, tile_s=256,
                        vmem_budget_bytes=1 << 20))
    ref3 = jnp.einsum("bct,bcs->bts", q3 * scale3, k3 * scale3)
    assert jnp.allclose(out3, ref3, atol=1e-3, rtol=1e-3)

    print("KERNEL_OK")
</pallas_src>

<mosaic_0001>
module attributes {stable_mosaic.version = 11 : i64} {
  func.func @_qk_kernel(%arg0: i32, %arg1: i32, %arg2: memref<1xf32, #tpu.memory_space<smem>>, %arg3: memref<1x32x64xf32, #tpu.memory_space<vmem>>, %arg4: memref<1x32x64xf32, #tpu.memory_space<vmem>>, %arg5: memref<1x64x64xf32, #tpu.memory_space<vmem>>) attributes {dimension_semantics = [#tpu.dimension_semantics<parallel>, #tpu.dimension_semantics<parallel>], iteration_bounds = array<i64: 2, 1>, scalar_prefetch = 1 : i64, scratch_operands = 0 : i64, tpu.core_type = #tpu.core_type<tc>, window_params = [{transform_indices = @transform_0, window_bounds = array<i64: 1, 32, 64>}, {transform_indices = @transform_1, window_bounds = array<i64: 1, 32, 64>}, {transform_indices = @transform_2, window_bounds = array<i64: 1, 64, 64>}]} {
    %c0 = arith.constant 0 : index
    %c0_0 = arith.constant 0 : index
    %c0_1 = arith.constant 0 : index
    %0 = vector.load %arg3[%c0, %c0_0, %c0_1] : memref<1x32x64xf32, #tpu.memory_space<vmem>>, vector<1x32x64xf32>
    %1 = vector.shape_cast %0 : vector<1x32x64xf32> to vector<32x64xf32>
    %c0_2 = arith.constant 0 : index
    %c0_3 = arith.constant 0 : index
    %c0_4 = arith.constant 0 : index
    %2 = vector.load %arg4[%c0_2, %c0_3, %c0_4] : memref<1x32x64xf32, #tpu.memory_space<vmem>>, vector<1x32x64xf32>
    %3 = vector.shape_cast %2 : vector<1x32x64xf32> to vector<32x64xf32>
    %cst = arith.constant dense<0.000000e+00> : vector<64x64xf32>
    %4 = tpu.matmul %1, %3, %cst {dimension_numbers = #tpu.dot_dimension_numbers<[0], [0], [1], [1], [0, 1, 1, 1], [], []>} : vector<32x64xf32>, vector<32x64xf32>, vector<64x64xf32> -> vector<64x64xf32>
    %c0_5 = arith.constant 0 : index
    %5 = memref.load %arg2[%c0_5] : memref<1xf32, #tpu.memory_space<smem>>
    %c0_6 = arith.constant 0 : index
    %6 = memref.load %arg2[%c0_6] : memref<1xf32, #tpu.memory_space<smem>>
    %7 = arith.mulf %5, %6 : f32
    %8 = vector.broadcast %7 : f32 to vector<64x64xf32>
    %9 = arith.mulf %4, %8 : vector<64x64xf32>
    %c0_7 = arith.constant 0 : index
    %c0_8 = arith.constant 0 : index
    %c0_9 = arith.constant 0 : index
    %10 = vector.load %arg5[%c0_7, %c0_8, %c0_9] : memref<1x64x64xf32, #tpu.memory_space<vmem>>, vector<1x64x64xf32>
    %11 = vector.shape_cast %10 : vector<1x64x64xf32> to vector<64x64xf32>
    %12 = vector.shape_cast %9 : vector<64x64xf32> to vector<1x64x64xf32>
    tpu.vector_store %arg5[%c0_7, %c0_8, %c0_9], %12 {strides = array<i32>} : memref<1x64x64xf32, #tpu.memory_space<vmem>>, vector<1x64x64xf32>,
    return
  }
  func.func @transform_0(%arg0: i32, %arg1: i32, %arg2: memref<1xf32, #tpu.memory_space<smem>>) -> (i32, i32, i32) {
    %c0_i32 = arith.constant 0 : i32
    %c0_i32_0 = arith.constant 0 : i32
    return %arg0, %c0_i32, %arg1 : i32, i32, i32
  }
  func.func @transform_1(%arg0: i32, %arg1: i32, %arg2: memref<1xf32, #tpu.memory_space<smem>>) -> (i32, i32, i32) {
    %c0_i32 = arith.constant 0 : i32
    %c0_i32_0 = arith.constant 0 : i32
    %c0_i32_1 = arith.constant 0 : i32
    return %arg0, %c0_i32, %c0_i32_0 : i32, i32, i32
  }
  func.func @transform_2(%arg0: i32, %arg1: i32, %arg2: memref<1xf32, #tpu.memory_space<smem>>) -> (i32, i32, i32) {
    %c0_i32 = arith.constant 0 : i32
    %c0_i32_0 = arith.constant 0 : i32
    return %arg0, %arg1, %c0_i32 : i32, i32, i32
  }
}

</mosaic_0001>

<llo_original>
// kernel: tpu_custom_call.1
$region0: #{tpu_custom_call.1}
  #allocation0 [shape = 'u32[]', space=smem, size = 0x4, offset = 0x4, fixed_abs, tag = 'smem constant byte address 0x4 - core index']
  #allocation1 [shape = 'u32[144,128]{1,0:T(1,128)}', space=vmem, size = 0x12000, scoped, tag = 'internal scratch']
  #allocation2 [shape = 's32[1]{0}', space=sflag, size = 0x4, scoped, tag = 'scoped memory for tpu_custom_call.1']
  #allocation3 [shape = 'f32[1]{0:T(128)S(6)}', space=smem, size = 0x200, scoped, tag = 'prefetched SMEM operand 0']
  %s0 = inlined_call_operand.<no memory space> [shape: f32[1], index: 0, kind: input, shape index: {}]
  %s1 = inlined_call_operand.hbm [shape: f32[2,32,64], index: 1, kind: input, shape index: {}]
  %s2 = inlined_call_operand.hbm [shape: f32[2,32,64], index: 2, kind: input, shape index: {}]
  %s3 = inlined_call_operand.hbm [shape: f32[2,64,64], index: 3, kind: output, shape index: {}]
  %s4 = sld [smem:[#allocation0]]
  $region49: #{tpu_custom_call.1} parent=0
    _
  %s6 = ssub.s32 1, %s4
  %s7 = scalar_select 0, %s6, %s4
  %8 = sst [smem:[#allocation3]] %s0
  $region1: #{tpu_custom_call.1} parent=0
    #allocation4 [shape = 'u8[32768]{0}', space=vmem, size = 0x8000, scoped, tag = 'input window, operand 1']
    #allocation5 [shape = 's32[2]{0}', space=sflag, size = 0x8, scoped, tag = 'scoped memory for tpu_custom_call.1']
    #allocation6 [shape = 's32[2]{0}', space=sflag, size = 0x8, scoped, tag = 'scoped memory for tpu_custom_call.1']
    #allocation7 [shape = 'u8[32768]{0}', space=vmem, size = 0x8000, scoped, tag = 'input window, operand 2']
    #allocation8 [shape = 's32[2]{0}', space=sflag, size = 0x8, scoped, tag = 'scoped memory for tpu_custom_call.1']
    #allocation9 [shape = 'u8[65536]{0}', space=vmem, size = 0x10000, scoped, tag = 'output window, operand 0']
    %9 = vsyncpa [#allocation5], 0
    %s10 = scalar_lea.sflag [#allocation5], 1
    %11 = vsyncpa %s10, 0
    %12 = vsyncpa [#allocation8], 0
    %s13 = scalar_lea.sflag [#allocation8], 1
    %14 = vsyncpa %s13, 0
    %15 = vsyncpa [#allocation6], 0
    %s16 = scalar_lea.sflag [#allocation6], 1
    %17 = vsyncpa %s16, 0
    loop: start=0, step=1, limit=4
    $region2: #{tpu_custom_call.1} parent=1 // loop_pre_header
      _
    $region3: #{tpu_custom_call.1} parent=1 // loop_header
      %s19 = sphi 0, %s23
      %p20 = scmp.ge.s32.totalorder %s19, 4
      %s26 = sphi 0, %s38
      %s27 = sphi 0, %s34
      %s28 = sphi 0, %s26
      %s29 = sphi 0, %s27
      %s30 = sphi 0, %s28
      %s31 = sphi 0, %s29
      %s43 = sphi 0, %s45
      %s46 = sphi 0, %s43
      %s47 = sphi 0, %s46
      %s63 = sphi 0, %s47
      %s69 = sphi 0, %s71
      %s72 = sphi 0, %s69
      %s73 = sphi 0, %s72
      %s89 = sphi 0, %s73
      %s97 = sphi 0, %s99
      %s100 = sphi 0, %s97
      %s101 = sphi 0, %s100
      %s117 = sphi 0, %s101
    $region4: #{tpu_custom_call.1} parent=1 // loop_header_branch
      %22 = sbr.rel (%p20) target = $region8
    $region5: #{tpu_custom_call.1} parent=1 // loop_body
      %s24 = ssub.s32 %s19, 1
      %s25 = ssub.s32 %s19, 2
      %s32 = sadd.s32 1, %s27
      %p33 = scmp.ge.s32.totalorder %s32, 1
      %s34 = scalar_select %p33, 0, %s32
      %s35 = sadd.s32 1, %s26
      %s36 = scalar_select %p33, %s35, %s26
      %p37 = scmp.ge.s32.totalorder %s36, 2
      %s38 = scalar_select %p37, 0, %s36
      %s39 = ssub.s32 %s26, %s38
      %s40 = ssub.s32 %s27, %s34
      %s41 = sor.u32 %s39, %s40
      %p42 = scmp.eq.s32.totalorder %s41, 0
      %s44 = sadd.s32 %s43, 1
      %s45 = scalar_select %p42, %s43, %s44
      %p48 = pneg %p42
      %p49 = scmp.eq.s32.totalorder %s19, 1
      %p50 = por %p48, %p49
      %p51 = scmp.ne.s32.totalorder %s43, %s46
      %p52 = scmp.eq.s32.totalorder %s19, 0
      %p53 = por %p51, %p52
      %p54 = scmp.ne.s32.totalorder %s43, %s46
      %p55 = scmp.eq.s32.totalorder %s24, 1
      %p56 = por %p54, %p55
      %p57 = scmp.ne.s32.totalorder %s46, %s47
      %p58 = scmp.eq.s32.totalorder %s24, 0
      %p59 = por %p57, %p58
      %p60 = scmp.ne.s32.totalorder %s46, %s47
      %p61 = scmp.eq.s32.totalorder %s25, 1
      %p62 = por %p60, %p61
      %p64 = scmp.ne.s32.totalorder %s47, %s63
      %p65 = scmp.eq.s32.totalorder %s25, 0
      %p66 = por %p64, %p65
      %s67 = ssub.s32 %s26, %s38
      %p68 = scmp.eq.s32.totalorder %s67, 0
      %s70 = sadd.s32 %s69, 1
      %s71 = scalar_select %p68, %s69, %s70
      %p74 = pneg %p68
      %p75 = scmp.eq.s32.totalorder %s19, 1
      %p76 = por %p74, %p75
      %p77 = scmp.ne.s32.totalorder %s69, %s72
      %p78 = scmp.eq.s32.totalorder %s19, 0
      %p79 = por %p77, %p78
      %p80 = scmp.ne.s32.totalorder %s69, %s72
      %p81 = scmp.eq.s32.totalorder %s24, 1
      %p82 = por %p80, %p81
      %p83 = scmp.ne.s32.totalorder %s72, %s73
      %p84 = scmp.eq.s32.totalorder %s24, 0
      %p85 = por %p83, %p84
      %p86 = scmp.ne.s32.totalorder %s72, %s73
      %p87 = scmp.eq.s32.totalorder %s25, 1
      %p88 = por %p86, %p87
      %p90 = scmp.ne.s32.totalorder %s73, %s89
      %p91 = scmp.eq.s32.totalorder %s25, 0
      %p92 = por %p90, %p91
      %s93 = ssub.s32 %s26, %s38
      %s94 = ssub.s32 %s27, %s34
      %s95 = sor.u32 %s93, %s94
      %p96 = scmp.eq.s32.totalorder %s95, 0
      %s98 = sadd.s32 %s97, 1
      %s99 = scalar_select %p96, %s97, %s98
      %p102 = pneg %p96
      %p103 = scmp.eq.s32.totalorder %s19, 1
      %p104 = por %p102, %p103
      %p105 = scmp.ne.s32.totalorder %s97, %s100
      %p106 = scmp.eq.s32.totalorder %s19, 0
      %p107 = por %p105, %p106
      %p108 = scmp.ne.s32.totalorder %s97, %s100
      %p109 = scmp.eq.s32.totalorder %s24, 1
      %p110 = por %p108, %p109
      %p111 = scmp.ne.s32.totalorder %s100, %s101
      %p112 = scmp.eq.s32.totalorder %s24, 0
      %p113 = por %p111, %p112
      %p114 = scmp.ne.s32.totalorder %s100, %s101
      %p115 = scmp.eq.s32.totalorder %s25, 1
      %p116 = por %p114, %p115
      %p118 = scmp.ne.s32.totalorder %s101, %s117
      %p119 = scmp.eq.s32.totalorder %s25, 0
      %p120 = por %p118, %p119
      %p121 = scmp.le.s32.totalorder 1, %s19
      %p122 = scmp.lt.s32.totalorder %s19, 3
      %p123 = pnand %p121, %p122
      %p124 = pneg %p123
      // Predicated region
      $region9: #{tpu_custom_call.1} parent=5 // pred_check
        _
      $region10: #{tpu_custom_call.1} parent=5 // pred_check_branch
        %126 = sbr.rel (%p123) target = $region12
      $region11: #{tpu_custom_call.1} parent=5 // pred_region
        %s127 = ssub.s32 %s19, 1
      $region12: #{tpu_custom_call.1} parent=5 // pred_fallthru
        _
      %p128 = scmp.lt.s32.totalorder %s19, 2
      // Predicated region
      $region13: #{tpu_custom_call.1} parent=5 // pred_check
        %p129 = pneg %p128
      $region14: #{tpu_custom_call.1} parent=5 // pred_check_branch
        %131 = sbr.rel (%p129) target = $region16
      $region15: #{tpu_custom_call.1} parent=5 // pred_region
        // Predicated region
        $region17: #{tpu_custom_call.1} parent=15 // pred_check
          %p132 = pneg %p53
        $region18: #{tpu_custom_call.1} parent=15 // pred_check_branch
          %134 = sbr.rel (%p132) target = $region20
        $region19: #{tpu_custom_call.1} parent=15 // pred_region
          %s135 = sand.u32 %s43, 1
          %s136 = scalar_lea.sflag [#allocation5], %s135
          %s137 = sand.u32 %s43, 1
          %s138 = smul.addr %s137, 32
          %s139 = scalar_lea.vmem [#allocation4], %s138
          %s141 = ssub.s32 512, 512
          %142 = vsyncadd %s136, %s141
          %s143 = smul.addr %s26, 4
          %s144 = sadd.s32 %s27, %s143
          %s145 = smul.addr %s144, 128
          %s146 = scalar_lea.hbm %s1, %s145
          %s147 = sshll.u32 %s139, 4
          %s148 = int_to_ptr.vmem [resolvable:$true] %s147
          %153 = dma.hbm_to_vmem [thread:$0]  %s146, 512, %s148, %s136, 128, 128, 8
        $region20: #{tpu_custom_call.1} parent=15 // pred_fallthru
          _
        // Predicated region
        $region21: #{tpu_custom_call.1} parent=15 // pred_check
          %p154 = pneg %p79
        $region22: #{tpu_custom_call.1} parent=15 // pred_check_branch
          %156 = sbr.rel (%p154) target = $region24
        $region23: #{tpu_custom_call.1} parent=15 // pred_region
          %s157 = sand.u32 %s69, 1
          %s158 = scalar_lea.sflag [#allocation8], %s157
          %s159 = sand.u32 %s69, 1
          %s160 = smul.addr %s159, 32
          %s161 = scalar_lea.vmem [#allocation7], %s160
          %s163 = ssub.s32 512, 512
          %164 = vsyncadd %s158, %s163
          %s165 = smul.addr %s26, 4
          %s166 = smul.addr %s165, 128
          %s167 = scalar_lea.hbm %s2, %s166
          %s168 = sshll.u32 %s161, 4
          %s169 = int_to_ptr.vmem [resolvable:$true] %s168
          %174 = dma.hbm_to_vmem [thread:$0]  %s167, 512, %s169, %s158, 128, 128, 8
        $region24: #{tpu_custom_call.1} parent=15 // pred_fallthru
          _
      $region16: #{tpu_custom_call.1} parent=5 // pred_fallthru
        _
      %p175 = scmp.le.s32.totalorder 1, %s19
      %p176 = scmp.lt.s32.totalorder %s19, 3
      %p177 = pnand %p175, %p176
      %p178 = pneg %p177
      // Predicated region
      $region25: #{tpu_custom_call.1} parent=5 // pred_check
        _
      $region26: #{tpu_custom_call.1} parent=5 // pred_check_branch
        %180 = sbr.rel (%p177) target = $region28
      $region27: #{tpu_custom_call.1} parent=5 // pred_region
        %s181 = ssub.s32 %s19, 1
        %s182 = sand.u32 %s46, 1
        %s183 = scalar_lea.sflag [#allocation5], %s182
        %s184 = sand.u32 %s46, 1
        %s185 = smul.addr %s184, 32
        %s186 = scalar_lea.vmem [#allocation4], %s185
        // Predicated region
        $region29: #{tpu_custom_call.1} parent=27 // pred_check
          %p187 = pneg %p59
        $region30: #{tpu_custom_call.1} parent=27 // pred_check_branch
          %189 = sbr.rel (%p187) target = $region32
        $region31: #{tpu_custom_call.1} parent=27 // pred_region
          %190 = dma.done %s183, 512
        $region32: #{tpu_custom_call.1} parent=27 // pred_fallthru
          _
        %s191 = sand.u32 %s72, 1
        %s192 = scalar_lea.sflag [#allocation8], %s191
        %s193 = sand.u32 %s72, 1
        %s194 = smul.addr %s193, 32
        %s195 = scalar_lea.vmem [#allocation7], %s194
        // Predicated region
        $region33: #{tpu_custom_call.1} parent=27 // pred_check
          %p196 = pneg %p85
        $region34: #{tpu_custom_call.1} parent=27 // pred_check_branch
          %198 = sbr.rel (%p196) target = $region36
        $region35: #{tpu_custom_call.1} parent=27 // pred_region
          %199 = dma.done %s192, 512
        $region36: #{tpu_custom_call.1} parent=27 // pred_fallthru
          _
        %s200 = sand.u32 %s46, 1
        %s201 = scalar_lea.sflag [#allocation5], %s200
        %s202 = sand.u32 %s46, 1
        %s203 = smul.addr %s202, 32
        %s204 = scalar_lea.vmem [#allocation4], %s203
        %p205 = pneg %p59
        %p206 = pneg %p56
        %s207 = sand.u32 %s72, 1
        %s208 = scalar_lea.sflag [#allocation8], %s207
        %s209 = sand.u32 %s72, 1
        %s210 = smul.addr %s209, 32
        %s211 = scalar_lea.vmem [#allocation7], %s210
        %p212 = pneg %p85
        %p213 = pneg %p82
        %p214 = pneg %p113
        %p215 = pneg %p110
        %s216 = sand.u32 %s100, 1
        %s217 = scalar_lea.sflag [#allocation6], %s216
        %s218 = sand.u32 %s100, 1
        %s219 = smul.addr %s218, 64
        %s220 = scalar_lea.vmem [#allocation9], %s219
        %s221 = smul.u32 8, %s29
        %v222 = vld [vmem:[%s186] sm:$0xff]
        %v223 = vld [vmem:[%s186 + $0x8] sm:$0xff]
        %v224 = vld [vmem:[%s186 + $0x10] sm:$0xff]
        %v225 = vld [vmem:[%s186 + $0x18] sm:$0xff]
        %v226 = vld [vmem:[%s195] sm:$0xff]
        %v227 = vld [vmem:[%s195 + $0x8] sm:$0xff]
        %v228 = vld [vmem:[%s195 + $0x10] sm:$0xff]
        %v229 = vld [vmem:[%s195 + $0x18] sm:$0xff]
        %230 = vxpose.xlu0.b32.start [1/16] %v222, 128
        %231 = vxpose.xlu0.b32.cont [2/16] %v223, 128
        %232 = vxpose.xlu0.b32.cont [3/16] %v224, 128
        %233 = vxpose.xlu0.b32.cont [4/16] %v225, 128
        %234 = vxpose.xlu0.b32.cont [5/16] 0.0, 128
        %235 = vxpose.xlu0.b32.cont [6/16] 0.0, 128
        %236 = vxpose.xlu0.b32.cont [7/16] 0.0, 128
        %237 = vxpose.xlu0.b32.cont [8/16] 0.0, 128
        %238 = vxpose.xlu0.b32.cont [9/16] 0.0, 128
        %239 = vxpose.xlu0.b32.cont [10/16] 0.0, 128
        %240 = vxpose.xlu0.b32.cont [11/16] 0.0, 128
        %241 = vxpose.xlu0.b32.cont [12/16] 0.0, 128
        %242 = vxpose.xlu0.b32.cont [13/16] 0.0, 128
        %243 = vxpose.xlu0.b32.cont [14/16] 0.0, 128
        %244 = vxpose.xlu0.b32.cont [15/16] 0.0, 128
        %245 = vxpose.xlu0.b32.end [16/16] 0.0, 128
        %v246 = vpop.trf.xlu0
        %v247 = vpop.trf.xlu0
        %v248 = vpop.trf.xlu0
        %v249 = vpop.trf.xlu0
        %v250 = vpop.trf.xlu0
        %v251 = vpop.trf.xlu0
        %v252 = vpop.trf.xlu0
        %v253 = vpop.trf.xlu0
        %v254 = vpop.trf.xlu0
        %v255 = vpop.trf.xlu0
        %v256 = vpop.trf.xlu0
        %v257 = vpop.trf.xlu0
        %v258 = vpop.trf.xlu0
        %v259 = vpop.trf.xlu0
        %v260 = vpop.trf.xlu0
        %v261 = vpop.trf.xlu0
        %vm262 = vcmask 261120
        %v264 = vsel %vm262, %v246, 0
        %v267 = vsel %vm262, %v247, 0
        %v270 = vsel %vm262, %v248, 0
        %v273 = vsel %vm262, %v249, 0
        %v276 = vsel %vm262, %v250, 0
        %v279 = vsel %vm262, %v251, 0
        %v282 = vsel %vm262, %v252, 0
        %v285 = vsel %vm262, %v253, 0
        %287 = vmatprep.subr.mxu0 0.0
        %288 = vmatpush1.msra.mxu0 0.0
        %289 = vmatprep.subr.mxu0 0.0
        %290 = vmatpush1.msra.mxu0 0.0
        %291 = vmatprep.subr.mxu0 0.0
        %292 = vmatpush1.msra.mxu0 0.0
        %293 = vmatprep.subr.mxu0 0.0
        %294 = vmatpush1.msra.mxu0 0.0
        %295 = vmatprep.subr.mxu0 0.0
        %296 = vmatpush1.msra.mxu0 0.0
        %297 = vmatprep.subr.mxu0 0.0
        %298 = vmatpush1.msra.mxu0 0.0
        %299 = vmatprep.subr.mxu0 0.0
        %300 = vmatpush1.msra.mxu0 0.0
        %301 = vmatprep.subr.mxu0 0.0
        %302 = vmatpush1.msra.mxu0 0.0
        %303 = vmatprep.subr.mxu0 0.0
        %304 = vmatpush1.msra.mxu0 0.0
        %305 = vmatprep.subr.mxu0 0.0
        %306 = vmatpush1.msra.mxu0 0.0
        %307 = vmatprep.subr.mxu0 0.0
        %308 = vmatpush1.msra.mxu0 0.0
        %309 = vmatprep.subr.mxu0 0.0
        %310 = vmatpush1.msra.mxu0 0.0
        %311 = vmatprep.subr.mxu0 0.0
        %312 = vmatpush1.msra.mxu0 %v229
        %313 = vmatprep.subr.mxu0 0.0
        %314 = vmatpush1.msra.mxu0 %v228
        %315 = vmatprep.subr.mxu0 0.0
        %316 = vmatpush1.msra.mxu0 %v227
        %317 = vmatprep.subr.mxu0 0.0
        %318 = vmatpush1.msra.mxu0 %v226
        %319 = vmatprep.subr.mxu0 0.0
        %320 = vmatpush2.msra.mxu0 0.0
        %321 = vmatprep.subr.mxu0 0.0
        %322 = vmatpush2.msra.mxu0 0.0
        %323 = vmatprep.subr.mxu0 0.0
        %324 = vmatpush2.msra.mxu0 0.0
        %325 = vmatprep.subr.mxu0 0.0
        %326 = vmatpush2.msra.mxu0 0.0
        %327 = vmatprep.subr.mxu0 0.0
        %328 = vmatpush2.msra.mxu0 0.0
        %329 = vmatprep.subr.mxu0 0.0
        %330 = vmatpush2.msra.mxu0 0.0
        %331 = vmatprep.subr.mxu0 0.0
        %332 = vmatpush2.msra.mxu0 0.0
        %333 = vmatprep.subr.mxu0 0.0
        %334 = vmatpush2.msra.mxu0 0.0
        %335 = vmatprep.subr.mxu0 0.0
        %336 = vmatpush2.msra.mxu0 0.0
        %337 = vmatprep.subr.mxu0 0.0
        %338 = vmatpush2.msra.mxu0 0.0
        %339 = vmatprep.subr.mxu0 0.0
        %340 = vmatpush2.msra.mxu0 0.0
        %341 = vmatprep.subr.mxu0 0.0
        %342 = vmatpush2.msra.mxu0 0.0
        %343 = vmatprep.subr.mxu0 0.0
        %344 = vmatpush2.msra.mxu0 0.0
        %345 = vmatprep.subr.mxu0 0.0
        %346 = vmatpush2.msra.mxu0 0.0
        %347 = vmatprep.subr.mxu0 0.0
        %348 = vmatpush2.msra.mxu0 0.0
        %349 = vmatprep.subr.mxu0 0.0
        %350 = vmatpush2.msra.mxu0 0.0
        %351 = vmatprep.mubr.f32.mxu0 0.0
        %352 = vmatmul.mubr.f32.gmra.mxu0 %v264
        %v353 = vpop.f32.mrf.mxu0
        %v354 = vadd.f32 0.0, %v353
        %v355 = vpop.f32.mrf.mxu0
        %356 = vmatprep.mubr.f32.mxu0 0.0
        %357 = vmatmul.mubr.f32.gmra.mxu0 %v267
        %v358 = vpop.f32.mrf.mxu0
        %v359 = vadd.f32 0.0, %v358
        %v360 = vpop.f32.mrf.mxu0
        %361 = vmatprep.mubr.f32.mxu0 0.0
        %362 = vmatmul.mubr.f32.gmra.mxu0 %v270
        %v363 = vpop.f32.mrf.mxu0
        %v364 = vadd.f32 0.0, %v363
        %v365 = vpop.f32.mrf.mxu0
        %366 = vmatprep.mubr.f32.mxu0 0.0
        %367 = vmatmul.mubr.f32.gmra.mxu0 %v273
        %v368 = vpop.f32.mrf.mxu0
        %v369 = vadd.f32 0.0, %v368
        %v370 = vpop.f32.mrf.mxu0
        %371 = vmatprep.mubr.f32.mxu0 0.0
        %372 = vmatmul.mubr.f32.gmra.mxu0 %v276
        %v373 = vpop.f32.mrf.mxu0
        %v374 = vadd.f32 0.0, %v373
        %v375 = vpop.f32.mrf.mxu0
        %376 = vmatprep.mubr.f32.mxu0 0.0
        %377 = vmatmul.mubr.f32.gmra.mxu0 %v279
        %v378 = vpop.f32.mrf.mxu0
        %v379 = vadd.f32 0.0, %v378
        %v380 = vpop.f32.mrf.mxu0
        %381 = vmatprep.mubr.f32.mxu0 0.0
        %382 = vmatmul.mubr.f32.gmra.mxu0 %v282
        %v383 = vpop.f32.mrf.mxu0
        %v384 = vadd.f32 0.0, %v383
        %v385 = vpop.f32.mrf.mxu0
        %386 = vmatprep.mubr.f32.mxu0 0.0
        %387 = vmatmul.mubr.f32.gmra.mxu0 %v285
        %v388 = vpop.f32.mrf.mxu0
        %v389 = vadd.f32 0.0, %v388
        %v390 = vpop.f32.mrf.mxu0
        %391 = vdwg.mxu0
        %s392 = sld [smem:[#allocation3]]
        %s393 = smul.f32 %s392, %s392
        %v394 = vstv %s393
        %v395 = vmul.f32 %v354, %v394
        %v396 = vmul.f32 %v359, %v394
        %v397 = vmul.f32 %v364, %v394
        %v398 = vmul.f32 %v369, %v394
        %v399 = vmul.f32 %v374, %v394
        %v400 = vmul.f32 %v379, %v394
        %v401 = vmul.f32 %v384, %v394
        %v402 = vmul.f32 %v389, %v394
        %vm403 = vcmask 523264
        %404 = vst.msk [vmem:[%s220] sm:$0xff] %vm403, %v395
        %405 = vst.msk [vmem:[%s220 + $0x8] sm:$0xff] %vm403, %v396
        %406 = vst.msk [vmem:[%s220 + $0x10] sm:$0xff] %vm403, %v397
        %407 = vst.msk [vmem:[%s220 + $0x18] sm:$0xff] %vm403, %v398
        %408 = vst.msk [vmem:[%s220 + $0x20] sm:$0xff] %vm403, %v399
        %409 = vst.msk [vmem:[%s220 + $0x28] sm:$0xff] %vm403, %v400
        %410 = vst.msk [vmem:[%s220 + $0x30] sm:$0xff] %vm403, %v401
        %411 = vst.msk [vmem:[%s220 + $0x38] sm:$0xff] %vm403, %v402
        %s412 = sand.u32 %s100, 1
        %s413 = scalar_lea.sflag [#allocation6], %s412
        %s414 = sand.u32 %s100, 1
        %s415 = smul.addr %s414, 64
        %s416 = scalar_lea.vmem [#allocation9], %s415
        // Predicated region
        $region37: #{tpu_custom_call.1} parent=27 // pred_check
          %p417 = pneg %p110
        $region38: #{tpu_custom_call.1} parent=27 // pred_check_branch
          %419 = sbr.rel (%p417) target = $region40
        $region39: #{tpu_custom_call.1} parent=27 // pred_region
          %s420 = smul.u32 8, %s29
          %s422 = ssub.s32 1024, 1024
          %423 = vsyncadd %s413, %s422
          %s424 = smul.addr %s28, 8
          %s425 = sadd.s32 %s420, %s424
          %s426 = smul.addr %s425, 128
          %s427 = scalar_lea.hbm %s3, %s426
          %s428 = sshll.u32 %s416, 4
          %s429 = int_to_ptr.vmem [resolvable:$true] %s428
          %434 = dma.vmem_to_hbm [thread:$0]  %s429, 1024, %s427, %s413, 128, 128, 8
        $region40: #{tpu_custom_call.1} parent=27 // pred_fallthru
          _
      $region28: #{tpu_custom_call.1} parent=5 // pred_fallthru
        _
      %p435 = scmp.le.s32.totalorder 2, %s19
      // Predicated region
      $region41: #{tpu_custom_call.1} parent=5 // pred_check
        %p436 = pneg %p435
      $region42: #{tpu_custom_call.1} parent=5 // pred_check_branch
        %438 = sbr.rel (%p436) target = $region44
      $region43: #{tpu_custom_call.1} parent=5 // pred_region
        %s439 = ssub.s32 %s19, 2
        // Predicated region
        $region45: #{tpu_custom_call.1} parent=43 // pred_check
          %p440 = pneg %p116
        $region46: #{tpu_custom_call.1} parent=43 // pred_check_branch
          %442 = sbr.rel (%p440) target = $region48
        $region47: #{tpu_custom_call.1} parent=43 // pred_region
          %s443 = sand.u32 %s101, 1
          %s444 = scalar_lea.sflag [#allocation6], %s443
          %s445 = sand.u32 %s101, 1
          %s446 = smul.addr %s445, 64
          %s447 = scalar_lea.vmem [#allocation9], %s446
          %448 = dma.done %s444, 1024
        $region48: #{tpu_custom_call.1} parent=43 // pred_fallthru
          _
      $region44: #{tpu_custom_call.1} parent=5 // pred_fallthru
        _
    $region6: #{tpu_custom_call.1} parent=1 // loop_footer
      %s23 = sadd.s32 1, %s19
    $region7: #{tpu_custom_call.1} parent=1 // loop_footer_branch
      %18 = sbr.rel target = $region3
    $region8: #{tpu_custom_call.1} parent=1 // loop_exit
      _
    %449 = vsyncpa [#allocation5], 1
    %s450 = scalar_lea.sflag [#allocation5], 1
    %451 = vsyncpa %s450, 1
    %452 = vsyncpa [#allocation8], 1
    %s453 = scalar_lea.sflag [#allocation8], 1
    %454 = vsyncpa %s453, 1
    %455 = vsyncpa [#allocation6], 1
    %s456 = scalar_lea.sflag [#allocation6], 1
    %457 = vsyncpa %s456, 1

</llo_original>
